<compile_context>
chip_gen: v6e
topology: v6e:2x2x1
jax: 0.10.0
libtpu: 0.0.40
codegen_flags: <defaults>
</compile_context>

<pallas_src>
import jax
import jax.numpy as jnp
from jax.experimental import pallas as pl
from jax.experimental.pallas import tpu as pltpu


def _conv3x3_rows(x, w_ref, bias):
    """Row-Toeplitz 3x3 conv on a (H, K) slab -> (H, N).

    w_ref is a (3, K, N) ref of per-ky Toeplitz matrices (width padding baked
    in).  Height 'same' zero padding is realized by shifting the per-ky matmul
    results by +/-1 row, entirely in vregs (no VMEM staging).
    """
    r0 = jnp.dot(x, w_ref[0], preferred_element_type=jnp.float32)
    r1 = jnp.dot(x, w_ref[1], preferred_element_type=jnp.float32)
    r2 = jnp.dot(x, w_ref[2], preferred_element_type=jnp.float32)
    zrow = jnp.zeros((1, r1.shape[1]), jnp.float32)
    r0s = jnp.concatenate([zrow, r0[:-1, :]], axis=0)   # out[h] += in[h-1] @ w[0]
    r2s = jnp.concatenate([r2[1:, :], zrow], axis=0)    # out[h] += in[h+1] @ w[2]
    return r0s + r1 + r2s + bias


def _features_processing_kernel(
    x_ref,      # (1, H, W*Cin)          channel-folded input slab
    w1_ref,     # (3, W*Cin, W*Cmid)     conv1 row-Toeplitz weights (per ky)
    b1_ref,     # (1, W*Cmid)            conv1 bias, tiled over W
    w2_ref,     # (3, W*Cmid, W*Cout)    conv2 row-Toeplitz weights (per ky)
    b2_ref,     # (1, W*Cout)            conv2 bias + bottleneck bias, tiled
    wb_ref,     # (W*Cin, W*Cout)        block-diagonal 1x1 bottleneck weights
    out_ref,    # (1, H, W*Cout)
):
    x = x_ref[0].astype(jnp.float32)                        # (H, W*Cin)

    # ---- conv1: 3x3, zero pad, Cin -> Cmid, then ReLU ------------------------
    y1 = jnp.maximum(_conv3x3_rows(x, w1_ref, b1_ref[...]), 0.0)

    # ---- conv2 (3x3) + fused 1x1 bottleneck residual -------------------------
    y2 = _conv3x3_rows(y1, w2_ref, b2_ref[...])
    y2 = y2 + jnp.dot(x, wb_ref[...], preferred_element_type=jnp.float32)

    # ---- final ReLU(hx + y); full-lane (W*Cout) store -------------------------
    out_ref[0] = jnp.maximum(y2, 0.0).astype(out_ref.dtype)


def _toeplitz_conv3x3(w_hwio, width):
    """Fold a (3, 3, Cin, Cout) HWIO kernel into per-ky row matmul matrices.

    Returns (3, width*Cin, width*Cout).  Output column w*Cout+co of matrix ky
    reads input columns (w+kx-1)*Cin..+Cin for kx in {0,1,2}; the zero 'same'
    padding along the width axis is baked in by dropping out-of-range taps.
    """
    kh, kw, _, _ = w_hwio.shape
    cols = jnp.arange(width)
    mats = []
    for ky in range(kh):
        m = None
        for kx in range(kw):
            src = cols + kx - (kw // 2)
            valid = ((src >= 0) & (src < width)).astype(w_hwio.dtype)
            sel = jnp.zeros((width, width), w_hwio.dtype)
            sel = sel.at[jnp.clip(src, 0, width - 1), cols].set(valid)
            blk = jnp.kron(sel, w_hwio[ky, kx])
            m = blk if m is None else m + blk
        mats.append(m)
    return jnp.stack(mats, axis=0)


def features_processing(x_nhwc, w1, b1, w2, b2, wb, bb):
    """x_nhwc: (N, H, W, Cin) float32; w1/w2 in HWIO; wb: (Cin, Cout)."""
    N, H, W, Cin = x_nhwc.shape
    Cmid = w1.shape[3]
    Cout = w2.shape[3]

    # Channel-folded, lane-dense input slab (channels fastest within a row).
    x_f = x_nhwc.reshape(N, H, W * Cin)

    # Wrapper-side weight folding (traced once; free at kernel runtime).
    w1_t = _toeplitz_conv3x3(w1, W)                          # (3, W*Cin, W*Cmid)
    w2_t = _toeplitz_conv3x3(w2, W)                          # (3, W*Cmid, W*Cout)
    wb_t = jnp.kron(jnp.eye(W, dtype=wb.dtype), wb)          # (W*Cin, W*Cout)

    b1_f = jnp.tile(b1, W).reshape(1, W * Cmid)
    b2_f = jnp.tile(b2 + bb, W).reshape(1, W * Cout)         # bneck bias folded in

    out_f = pl.pallas_call(
        _features_processing_kernel,
        out_shape=jax.ShapeDtypeStruct((N, H, W * Cout), x_nhwc.dtype),
        grid_spec=pltpu.PrefetchScalarGridSpec(
            num_scalar_prefetch=0,
            grid=(N,),
            in_specs=[
                pl.BlockSpec((1, H, W * Cin), lambda n: (n, 0, 0)),
                pl.BlockSpec((3, W * Cin, W * Cmid), lambda n: (0, 0, 0)),
                pl.BlockSpec((1, W * Cmid), lambda n: (0, 0)),
                pl.BlockSpec((3, W * Cmid, W * Cout), lambda n: (0, 0, 0)),
                pl.BlockSpec((1, W * Cout), lambda n: (0, 0)),
                pl.BlockSpec((W * Cin, W * Cout), lambda n: (0, 0)),
            ],
            out_specs=pl.BlockSpec((1, H, W * Cout), lambda n: (n, 0, 0)),
        ),
        compiler_params=pltpu.CompilerParams(
            dimension_semantics=("parallel",)),
    )(x_f, w1_t, b1_f, w2_t, b2_f, wb_t)

    return out_f.reshape(N, H, W, Cout)


def _reference_nchw(x_nchw, w1_oihw, b1, w2_oihw, b2, wb_oihw, bb):
    """Plain-JAX reference matching torch semantics (NCHW / OIHW, zero pad)."""
    def conv(x, w, b, pad):
        y = jax.lax.conv_general_dilated(
            x, w, window_strides=(1, 1), padding=[(pad, pad), (pad, pad)],
            dimension_numbers=("NCHW", "OIHW", "NCHW"))
        return y + b[None, :, None, None]

    y = jax.nn.relu(conv(x_nchw, w1_oihw, b1, 1))
    y = conv(y, w2_oihw, b2, 1)
    hx = conv(x_nchw, wb_oihw, bb, 0)
    return jax.nn.relu(hx + y)


if __name__ == "__main__":
    N, in_ch, out_ch, H, W = 2, 4, 8, 16, 16
    mid_ch = in_ch * 2

    key = jax.random.PRNGKey(0)
    k = jax.random.split(key, 7)

    # Deterministic synthetic parameters, in PyTorch (OIHW) convention.
    w1_oihw = jax.random.normal(k[0], (mid_ch, in_ch, 3, 3), jnp.float32) * 0.1
    b1 = jax.random.normal(k[1], (mid_ch,), jnp.float32) * 0.1
    w2_oihw = jax.random.normal(k[2], (out_ch, mid_ch, 3, 3), jnp.float32) * 0.1
    b2 = jax.random.normal(k[3], (out_ch,), jnp.float32) * 0.1
    wb_oihw = jax.random.normal(k[4], (out_ch, in_ch, 1, 1), jnp.float32) * 0.1
    bb = jax.random.normal(k[5], (out_ch,), jnp.float32) * 0.1

    x_nchw = jax.random.normal(k[6], (N, in_ch, H, W), jnp.float32)

    # Convert to kernel layouts: NHWC activations, HWIO weights.
    x_nhwc = jnp.transpose(x_nchw, (0, 2, 3, 1))
    w1_hwio = jnp.transpose(w1_oihw, (2, 3, 1, 0))
    w2_hwio = jnp.transpose(w2_oihw, (2, 3, 1, 0))
    wb_io = jnp.transpose(wb_oihw[:, :, 0, 0], (1, 0))       # (Cin, Cout)

    fp = jax.jit(features_processing)
    out_nhwc = fp(x_nhwc, w1_hwio, b1, w2_hwio, b2, wb_io, bb)
    out_nhwc = jax.block_until_ready(out_nhwc)
    out_nchw = jnp.transpose(out_nhwc, (0, 3, 1, 2))

    ref = _reference_nchw(x_nchw, w1_oihw, b1, w2_oihw, b2, wb_oihw, bb)
    ref = jax.block_until_ready(ref)

    assert out_nchw.shape == (N, out_ch, H, W)
    assert jnp.allclose(out_nchw, ref, rtol=1e-3, atol=1e-3), (
        float(jnp.max(jnp.abs(out_nchw - ref))))

    print("KERNEL_OK")
</pallas_src>

<mosaic_0001>
module attributes {stable_mosaic.version = 11 : i64} {
  func.func @_features_processing_kernel(%arg0: i32, %arg1: memref<1x16x64xf32, #tpu.memory_space<vmem>>, %arg2: memref<3x64x128xf32, #tpu.memory_space<vmem>>, %arg3: memref<1x128xf32, #tpu.memory_space<vmem>>, %arg4: memref<3x128x128xf32, #tpu.memory_space<vmem>>, %arg5: memref<1x128xf32, #tpu.memory_space<vmem>>, %arg6: memref<64x128xf32, #tpu.memory_space<vmem>>, %arg7: memref<1x16x128xf32, #tpu.memory_space<vmem>>) attributes {dimension_semantics = [#tpu.dimension_semantics<parallel>], iteration_bounds = array<i64: 2>, scalar_prefetch = 0 : i64, scratch_operands = 0 : i64, tpu.core_type = #tpu.core_type<tc>, window_params = [{transform_indices = @transform_0, window_bounds = array<i64: 1, 16, 64>}, {pipeline_mode = #tpu.pipeline_mode<synchronous>, transform_indices = @transform_1, window_bounds = array<i64: 3, 64, 128>}, {pipeline_mode = #tpu.pipeline_mode<synchronous>, transform_indices = @transform_2, window_bounds = array<i64: 1, 128>}, {pipeline_mode = #tpu.pipeline_mode<synchronous>, transform_indices = @transform_3, window_bounds = array<i64: 3, 128, 128>}, {pipeline_mode = #tpu.pipeline_mode<synchronous>, transform_indices = @transform_4, window_bounds = array<i64: 1, 128>}, {pipeline_mode = #tpu.pipeline_mode<synchronous>, transform_indices = @transform_5, window_bounds = array<i64: 64, 128>}, {transform_indices = @transform_6, window_bounds = array<i64: 1, 16, 128>}]} {
    %c0 = arith.constant 0 : index
    %c0_0 = arith.constant 0 : index
    %c0_1 = arith.constant 0 : index
    %0 = vector.load %arg1[%c0, %c0_0, %c0_1] : memref<1x16x64xf32, #tpu.memory_space<vmem>>, vector<1x16x64xf32>
    %1 = vector.shape_cast %0 : vector<1x16x64xf32> to vector<16x64xf32>
    %c0_2 = arith.constant 0 : index
    %c0_3 = arith.constant 0 : index
    %2 = vector.load %arg3[%c0_2, %c0_3] : memref<1x128xf32, #tpu.memory_space<vmem>>, vector<1x128xf32>
    %c0_4 = arith.constant 0 : index
    %c0_5 = arith.constant 0 : index
    %c0_6 = arith.constant 0 : index
    %3 = vector.load %arg2[%c0_4, %c0_5, %c0_6] : memref<3x64x128xf32, #tpu.memory_space<vmem>>, vector<1x64x128xf32>
    %4 = vector.shape_cast %3 : vector<1x64x128xf32> to vector<64x128xf32>
    %cst = arith.constant dense<0.000000e+00> : vector<16x128xf32>
    %5 = tpu.matmul %1, %4, %cst {dimension_numbers = #tpu.dot_dimension_numbers<[1], [0], [0], [1], [0, 0, 1, 1], [], []>} : vector<16x64xf32>, vector<64x128xf32>, vector<16x128xf32> -> vector<16x128xf32>
    %c1 = arith.constant 1 : index
    %c0_7 = arith.constant 0 : index
    %c0_8 = arith.constant 0 : index
    %6 = vector.load %arg2[%c1, %c0_7, %c0_8] : memref<3x64x128xf32, #tpu.memory_space<vmem>>, vector<1x64x128xf32>
    %7 = vector.shape_cast %6 : vector<1x64x128xf32> to vector<64x128xf32>
    %cst_9 = arith.constant dense<0.000000e+00> : vector<16x128xf32>
    %8 = tpu.matmul %1, %7, %cst_9 {dimension_numbers = #tpu.dot_dimension_numbers<[1], [0], [0], [1], [0, 0, 1, 1], [], []>} : vector<16x64xf32>, vector<64x128xf32>, vector<16x128xf32> -> vector<16x128xf32>
    %c2 = arith.constant 2 : index
    %c0_10 = arith.constant 0 : index
    %c0_11 = arith.constant 0 : index
    %9 = vector.load %arg2[%c2, %c0_10, %c0_11] : memref<3x64x128xf32, #tpu.memory_space<vmem>>, vector<1x64x128xf32>
    %10 = vector.shape_cast %9 : vector<1x64x128xf32> to vector<64x128xf32>
    %cst_12 = arith.constant dense<0.000000e+00> : vector<16x128xf32>
    %11 = tpu.matmul %1, %10, %cst_12 {dimension_numbers = #tpu.dot_dimension_numbers<[1], [0], [0], [1], [0, 0, 1, 1], [], []>} : vector<16x64xf32>, vector<64x128xf32>, vector<16x128xf32> -> vector<16x128xf32>
    %cst_13 = arith.constant 0.000000e+00 : f32
    %12 = vector.broadcast %cst_13 : f32 to vector<1x128xf32>
    %13 = vector.extract_strided_slice %5 {offsets = [0, 0], sizes = [15, 128], strides = [1, 1]} : vector<16x128xf32> to vector<15x128xf32>
    %14 = tpu.concatenate %12, %13 in 0 : vector<1x128xf32>, vector<15x128xf32> -> vector<16x128xf32>
    %15 = vector.extract_strided_slice %11 {offsets = [1, 0], sizes = [15, 128], strides = [1, 1]} : vector<16x128xf32> to vector<15x128xf32>
    %16 = tpu.concatenate %15, %12 in 0 : vector<15x128xf32>, vector<1x128xf32> -> vector<16x128xf32>
    %17 = arith.addf %14, %8 : vector<16x128xf32>
    %18 = arith.addf %17, %16 : vector<16x128xf32>
    %19 = vector.broadcast %2 : vector<1x128xf32> to vector<16x128xf32>
    %20 = arith.addf %18, %19 : vector<16x128xf32>
    %cst_14 = arith.constant 0.000000e+00 : f32
    %21 = vector.broadcast %cst_14 : f32 to vector<16x128xf32>
    %22 = arith.maximumf %20, %21 : vector<16x128xf32>
    %c0_15 = arith.constant 0 : index
    %c0_16 = arith.constant 0 : index
    %23 = vector.load %arg5[%c0_15, %c0_16] : memref<1x128xf32, #tpu.memory_space<vmem>>, vector<1x128xf32>
    %c0_17 = arith.constant 0 : index
    %c0_18 = arith.constant 0 : index
    %c0_19 = arith.constant 0 : index
    %24 = vector.load %arg4[%c0_17, %c0_18, %c0_19] : memref<3x128x128xf32, #tpu.memory_space<vmem>>, vector<1x128x128xf32>
    %25 = vector.shape_cast %24 : vector<1x128x128xf32> to vector<128x128xf32>
    %cst_20 = arith.constant dense<0.000000e+00> : vector<16x128xf32>
    %26 = tpu.matmul %22, %25, %cst_20 {dimension_numbers = #tpu.dot_dimension_numbers<[1], [0], [0], [1], [0, 0, 1, 1], [], []>} : vector<16x128xf32>, vector<128x128xf32>, vector<16x128xf32> -> vector<16x128xf32>
    %c1_21 = arith.constant 1 : index
    %c0_22 = arith.constant 0 : index
    %c0_23 = arith.constant 0 : index
    %27 = vector.load %arg4[%c1_21, %c0_22, %c0_23] : memref<3x128x128xf32, #tpu.memory_space<vmem>>, vector<1x128x128xf32>
    %28 = vector.shape_cast %27 : vector<1x128x128xf32> to vector<128x128xf32>
    %cst_24 = arith.constant dense<0.000000e+00> : vector<16x128xf32>
    %29 = tpu.matmul %22, %28, %cst_24 {dimension_numbers = #tpu.dot_dimension_numbers<[1], [0], [0], [1], [0, 0, 1, 1], [], []>} : vector<16x128xf32>, vector<128x128xf32>, vector<16x128xf32> -> vector<16x128xf32>
    %c2_25 = arith.constant 2 : index
    %c0_26 = arith.constant 0 : index
    %c0_27 = arith.constant 0 : index
    %30 = vector.load %arg4[%c2_25, %c0_26, %c0_27] : memref<3x128x128xf32, #tpu.memory_space<vmem>>, vector<1x128x128xf32>
    %31 = vector.shape_cast %30 : vector<1x128x128xf32> to vector<128x128xf32>
    %cst_28 = arith.constant dense<0.000000e+00> : vector<16x128xf32>
    %32 = tpu.matmul %22, %31, %cst_28 {dimension_numbers = #tpu.dot_dimension_numbers<[1], [0], [0], [1], [0, 0, 1, 1], [], []>} : vector<16x128xf32>, vector<128x128xf32>, vector<16x128xf32> -> vector<16x128xf32>
    %cst_29 = arith.constant 0.000000e+00 : f32
    %33 = vector.broadcast %cst_29 : f32 to vector<1x128xf32>
    %34 = vector.extract_strided_slice %26 {offsets = [0, 0], sizes = [15, 128], strides = [1, 1]} : vector<16x128xf32> to vector<15x128xf32>
    %35 = tpu.concatenate %33, %34 in 0 : vector<1x128xf32>, vector<15x128xf32> -> vector<16x128xf32>
    %36 = vector.extract_strided_slice %32 {offsets = [1, 0], sizes = [15, 128], strides = [1, 1]} : vector<16x128xf32> to vector<15x128xf32>
    %37 = tpu.concatenate %36, %33 in 0 : vector<15x128xf32>, vector<1x128xf32> -> vector<16x128xf32>
    %38 = arith.addf %35, %29 : vector<16x128xf32>
    %39 = arith.addf %38, %37 : vector<16x128xf32>
    %40 = vector.broadcast %23 : vector<1x128xf32> to vector<16x128xf32>
    %41 = arith.addf %39, %40 : vector<16x128xf32>
    %c0_30 = arith.constant 0 : index
    %c0_31 = arith.constant 0 : index
    %42 = vector.load %arg6[%c0_30, %c0_31] : memref<64x128xf32, #tpu.memory_space<vmem>>, vector<64x128xf32>
    %cst_32 = arith.constant dense<0.000000e+00> : vector<16x128xf32>
    %43 = tpu.matmul %1, %42, %cst_32 {dimension_numbers = #tpu.dot_dimension_numbers<[1], [0], [0], [1], [0, 0, 1, 1], [], []>} : vector<16x64xf32>, vector<64x128xf32>, vector<16x128xf32> -> vector<16x128xf32>
    %44 = arith.addf %41, %43 : vector<16x128xf32>
    %cst_33 = arith.constant 0.000000e+00 : f32
    %45 = vector.broadcast %cst_33 : f32 to vector<16x128xf32>
    %46 = arith.maximumf %44, %45 : vector<16x128xf32>
    %c0_34 = arith.constant 0 : index
    %c0_35 = arith.constant 0 : index
    %c0_36 = arith.constant 0 : index
    %47 = vector.load %arg7[%c0_34, %c0_35, %c0_36] : memref<1x16x128xf32, #tpu.memory_space<vmem>>, vector<1x16x128xf32>
    %48 = vector.shape_cast %47 : vector<1x16x128xf32> to vector<16x128xf32>
    %49 = vector.shape_cast %46 : vector<16x128xf32> to vector<1x16x128xf32>
    tpu.vector_store %arg7[%c0_34, %c0_35, %c0_36], %49 {strides = array<i32>} : memref<1x16x128xf32, #tpu.memory_space<vmem>>, vector<1x16x128xf32>,
    return
  }
  func.func @transform_0(%arg0: i32) -> (i32, i32, i32) {
    %c0_i32 = arith.constant 0 : i32
    %c0_i32_0 = arith.constant 0 : i32
    %c0_i32_1 = arith.constant 0 : i32
    return %arg0, %c0_i32, %c0_i32_0 : i32, i32, i32
  }
  func.func @transform_1(%arg0: i32) -> (i32, i32, i32) {
    %c0_i32 = arith.constant 0 : i32
    %c0_i32_0 = arith.constant 0 : i32
    %c0_i32_1 = arith.constant 0 : i32
    %c0_i32_2 = arith.constant 0 : i32
    return %c0_i32, %c0_i32_0, %c0_i32_1 : i32, i32, i32
  }
  func.func @transform_2(%arg0: i32) -> (i32, i32) {
    %c0_i32 = arith.constant 0 : i32
    %c0_i32_0 = arith.constant 0 : i32
    %c0_i32_1 = arith.constant 0 : i32
    return %c0_i32, %c0_i32_0 : i32, i32
  }
  func.func @transform_3(%arg0: i32) -> (i32, i32, i32) {
    %c0_i32 = arith.constant 0 : i32
    %c0_i32_0 = arith.constant 0 : i32
    %c0_i32_1 = arith.constant 0 : i32
    %c0_i32_2 = arith.constant 0 : i32
    return %c0_i32, %c0_i32_0, %c0_i32_1 : i32, i32, i32
  }
  func.func @transform_4(%arg0: i32) -> (i32, i32) {
    %c0_i32 = arith.constant 0 : i32
    %c0_i32_0 = arith.constant 0 : i32
    %c0_i32_1 = arith.constant 0 : i32
    return %c0_i32, %c0_i32_0 : i32, i32
  }
  func.func @transform_5(%arg0: i32) -> (i32, i32) {
    %c0_i32 = arith.constant 0 : i32
    %c0_i32_0 = arith.constant 0 : i32
    %c0_i32_1 = arith.constant 0 : i32
    return %c0_i32, %c0_i32_0 : i32, i32
  }
  func.func @transform_6(%arg0: i32) -> (i32, i32, i32) {
    %c0_i32 = arith.constant 0 : i32
    %c0_i32_0 = arith.constant 0 : i32
    %c0_i32_1 = arith.constant 0 : i32
    return %arg0, %c0_i32, %c0_i32_0 : i32, i32, i32
  }
}

</mosaic_0001>

<llo_original>
// kernel: tile.18
$region0: #{tile.18}
  #allocation0 [shape = 's32[1]{0}', space=sflag, size = 0x4, scoped, tag = 'scoped memory for tile.18']
  %s0 = inlined_call_operand.vmem [shape: f32[8], index: 0, kind: input, shape index: {}]
  %s1 = inlined_call_operand.vmem [shape: f32[16,8], index: 1, kind: output, shape index: {}]
  // Predicated region
  $region2: #{tile.18} parent=0 // pred_check
    _
  $region3: #{tile.18} parent=0 // pred_check_branch
    %3 = sbr.rel (0) target = $region5
  $region4: #{tile.18} parent=0 // pred_region
    _
  $region5: #{tile.18} parent=0 // pred_fallthru
    _
  %v4 = vld [vmem:[%s0] ss:$0 sm:$0xff]
  %5 = vst [vmem:[%s1] sm:$0xff] %v4
  %s6 = scalar_lea.vmem %s1, 8
  %7 = vst [vmem:[%s6] sm:$0xff] %v4

// kernel: tile.19
$region0: #{tile.19}
  %s0 = inlined_call_operand.vmem [shape: f32[16,8], index: 0, kind: input, shape index: {}]
  %s1 = inlined_call_operand.vmem [shape: f32[1,128], index: 1, kind: output, shape index: {}]
  $region1: #{tile.19} parent=0
    #allocation0 [shape = 'u8[4096]{0}', space=vmem, size = 0x1000, scoped, tag = 'scoped mem for output reshape']
    %v2 = vld [vmem:[%s0] sm:$0x1]
    %vm3 = vcmask 64512
    %4 = vst.msk [vmem:[#allocation0] sm:$0x1] %vm3, %v2
    %s5 = scalar_lea.vmem %s0, 15
    %v6 = vld [vmem:[%s5] sm:$0x1]
    %7 = vrot.lane.b32.xlu0 %v6, 120
    %v8 = vpop.permute.xlu0 %7
    %vm9 = vcmask 1048512
    %10 = vst.msk [vmem:[#allocation0] sm:$0x1] %vm9, %v8
    %s11 = scalar_lea.vmem %s0, 14
    %v12 = vld [vmem:[%s11] sm:$0x1]
    %13 = vrot.lane.b32.xlu0 %v12, 112
    %v14 = vpop.permute.xlu0 %13
    %vm15 = vcmask 982912
    %16 = vst.msk [vmem:[#allocation0] sm:$0x1] %vm15, %v14
    %s17 = scalar_lea.vmem %s0, 13
    %v18 = vld [vmem:[%s17] sm:$0x1]
    %19 = vrot.lane.b32.xlu0 %v18, 104
    %v20 = vpop.permute.xlu0 %19
    %vm21 = vcmask 917312
    %22 = vst.msk [vmem:[#allocation0] sm:$0x1] %vm21, %v20
    %s23 = scalar_lea.vmem %s0, 12
    %v24 = vld [vmem:[%s23] sm:$0x1]
    %25 = vrot.lane.b32.xlu0 %v24, 96
    %v26 = vpop.permute.xlu0 %25
    %vm27 = vcmask 851712
    %28 = vst.msk [vmem:[#allocation0] sm:$0x1] %vm27, %v26
    %s29 = scalar_lea.vmem %s0, 11
    %v30 = vld [vmem:[%s29] sm:$0x1]
    %31 = vrot.lane.b32.xlu0 %v30, 88
    %v32 = vpop.permute.xlu0 %31
    %vm33 = vcmask 786112
    %34 = vst.msk [vmem:[#allocation0] sm:$0x1] %vm33, %v32
    %s35 = scalar_lea.vmem %s0, 10
    %v36 = vld [vmem:[%s35] sm:$0x1]
    %37 = vrot.lane.b32.xlu0 %v36, 80
    %v38 = vpop.permute.xlu0 %37
    %vm39 = vcmask 720512
    %40 = vst.msk [vmem:[#allocation0] sm:$0x1] %vm39, %v38
    %s41 = scalar_lea.vmem %s0, 9
    %v42 = vld [vmem:[%s41] sm:$0x1]
    %43 = vrot.lane.b32.xlu0 %v42, 72
    %v44 = vpop.permute.xlu0 %43
    %vm45 = vcmask 654912
    %46 = vst.msk [vmem:[#allocation0] sm:$0x1] %vm45, %v44
    %s47 = scalar_lea.vmem %s0, 8
    %v48 = vld [vmem:[%s47] sm:$0x1]
    %49 = vrot.lane.b32.xlu0 %v48, 64
    %v50 = vpop.permute.xlu0 %49
    %vm51 = vcmask 589312
    %52 = vst.msk [vmem:[#allocation0] sm:$0x1] %vm51, %v50
    %s53 = scalar_lea.vmem %s0, 7
    %v54 = vld [vmem:[%s53] sm:$0x1]
    %55 = vrot.lane.b32.xlu0 %v54, 56
    %v56 = vpop.permute.xlu0 %55
    %vm57 = vcmask 523712
    %58 = vst.msk [vmem:[#allocation0] sm:$0x1] %vm57, %v56
    %s59 = scalar_lea.vmem %s0, 6
    %v60 = vld [vmem:[%s59] sm:$0x1]
    %61 = vrot.lane.b32.xlu0 %v60, 48
    %v62 = vpop.permute.xlu0 %61
    %vm63 = vcmask 458112
    %64 = vst.msk [vmem:[#allocation0] sm:$0x1] %vm63, %v62
    %s65 = scalar_lea.vmem %s0, 5
    %v66 = vld [vmem:[%s65] sm:$0x1]
    %67 = vrot.lane.b32.xlu0 %v66, 40
    %v68 = vpop.permute.xlu0 %67
    %vm69 = vcmask 392512
    %70 = vst.msk [vmem:[#allocation0] sm:$0x1] %vm69, %v68
    %s71 = scalar_lea.vmem %s0, 4
    %v72 = vld [vmem:[%s71] sm:$0x1]
    %73 = vrot.lane.b32.xlu0 %v72, 32
    %v74 = vpop.permute.xlu0 %73
    %vm75 = vcmask 326912
    %76 = vst.msk [vmem:[#allocation0] sm:$0x1] %vm75, %v74
    %s77 = scalar_lea.vmem %s0, 3
    %v78 = vld [vmem:[%s77] sm:$0x1]
    %79 = vrot.lane.b32.xlu0 %v78, 24
    %v80 = vpop.permute.xlu0 %79
    %vm81 = vcmask 261312
    %82 = vst.msk [vmem:[#allocation0] sm:$0x1] %vm81, %v80
    %s83 = scalar_lea.vmem %s0, 2
    %v84 = vld [vmem:[%s83] sm:$0x1]
    %85 = vrot.lane.b32.xlu0 %v84, 16
    %v86 = vpop.permute.xlu0 %85
    %vm87 = vcmask 195712
    %88 = vst.msk [vmem:[#allocation0] sm:$0x1] %vm87, %v86
    %s89 = scalar_lea.vmem %s0, 1
    %v90 = vld [vmem:[%s89] sm:$0x1]
    %91 = vrot.lane.b32.xlu0 %v90, 8
    %v92 = vpop.permute.xlu0 %91
    %vm93 = vcmask 130112
    %94 = vst.msk [vmem:[#allocation0] sm:$0x1] %vm93, %v92
    %s96 = sshll.u32 1, 1
    %s97 = ssub.s32 %s96, 1
    %v99 = vld [vmem:[#allocation0] sm:%s97]
    %s100 = sshll.u32 1, 1
    %s101 = ssub.s32 %s100, 1
    %102 = vst [vmem:[%s1] sm:%s101] %v99

// kernel: features_processing.1
$region0: #{features_processing.1}
  #allocation0 [shape = 'u32[]', space=smem, size = 0x4, offset = 0x4, fixed_abs, tag = 'smem constant byte address 0x4 - core index']
  #allocation1 [shape = 'u32[144,128]{1,0:T(1,128)}', space=vmem, size = 0x12000, scoped, tag = 'internal scratch']
  %s0 = inlined_call_operand.vmem [shape: f32[2,16,64], index: 0, kind: input, shape index: {}]
  %s1 = inlined_call_operand.vmem [shape: f32[3,64,128], index: 1, kind: input, shape index: {}]
  %s2 = inlined_call_operand.vmem [shape: f32[1,128], index: 2, kind: input, shape index: {}]
  %s3 = inlined_call_operand.vmem [shape: f32[3,128,128], index: 3, kind: input, shape index: {}]
  %s4 = inlined_call_operand.vmem [shape: f32[1,128], index: 4, kind: input, shape index: {}]
  %s5 = inlined_call_operand.vmem [shape: f32[64,128], index: 5, kind: input, shape index: {}]
  %s6 = inlined_call_operand.vmem [shape: f32[2,16,128], index: 6, kind: output, shape index: {}]
  %s7 = sld [smem:[#allocation0]]
  $region57: #{features_processing.1} parent=0
    _
  %s9 = ssub.s32 1, %s7
  %s10 = scalar_select 0, %s9, %s7
  loop: start=0, step=1, limit=4
  $region2: #{features_processing.1} parent=0 // loop_pre_header
    _
  $region3: #{features_processing.1} parent=0 // loop_header
    %s12 = sphi 0, %s16
    %p13 = scmp.ge.s32.totalorder %s12, 4
    %s22 = sphi 0, %s24
    %s25 = sphi 0, %s22
    %s26 = sphi 0, %s25
    %s42 = sphi 0, %s26
    %s46 = sphi 0, %s46
    %s48 = sphi 0, %s46
    %s49 = sphi 0, %s48
    %s63 = sphi 0, %s49
    %s67 = sphi 0, %s67
    %s69 = sphi 0, %s67
    %s70 = sphi 0, %s69
    %s84 = sphi 0, %s70
    %s88 = sphi 0, %s88
    %s90 = sphi 0, %s88
    %s91 = sphi 0, %s90
    %s105 = sphi 0, %s91
    %s109 = sphi 0, %s109
    %s111 = sphi 0, %s109
    %s112 = sphi 0, %s111
    %s126 = sphi 0, %s112
    %s130 = sphi 0, %s130
    %s132 = sphi 0, %s130
    %s133 = sphi 0, %s132
    %s147 = sphi 0, %s133
    %s153 = sphi 0, %s155
    %s156 = sphi 0, %s153
    %s157 = sphi 0, %s156
    %s173 = sphi 0, %s157
  $region4: #{features_processing.1} parent=0 // loop_header_branch
    %15 = sbr.rel (%p13) target = $region8
  $region5: #{features_processing.1} parent=0 // loop_body
    %s17 = ssub.s32 %s12, 1
    %s18 = ssub.s32 %s12, 2
    %s19 = sadd.s32 %s12, 1
    %s20 = ssub.s32 %s12, %s19
    %p21 = scmp.eq.s32.totalorder %s20, 0
    %s23 = sadd.s32 %s22, 1
    %s24 = scalar_select %p21, %s22, %s23
    %p27 = pneg %p21
    %p28 = scmp.eq.s32.totalorder %s12, 1
    %p29 = por %p27, %p28
    %p30 = scmp.ne.s32.totalorder %s22, %s25
    %p31 = scmp.eq.s32.totalorder %s12, 0
    %p32 = por %p30, %p31
    %p33 = scmp.ne.s32.totalorder %s22, %s25
    %p34 = scmp.eq.s32.totalorder %s17, 1
    %p35 = por %p33, %p34
    %p36 = scmp.ne.s32.totalorder %s25, %s26
    %p37 = scmp.eq.s32.totalorder %s17, 0
    %p38 = por %p36, %p37
    %p39 = scmp.ne.s32.totalorder %s25, %s26
    %p40 = scmp.eq.s32.totalorder %s18, 1
    %p41 = por %p39, %p40
    %p43 = scmp.ne.s32.totalorder %s26, %s42
    %p44 = scmp.eq.s32.totalorder %s18, 0
    %p45 = por %p43, %p44
    %s47 = sadd.s32 %s46, 1
    %p50 = scmp.eq.s32.totalorder %s12, 1
    %p51 = scmp.ne.s32.totalorder %s46, %s48
    %p52 = scmp.eq.s32.totalorder %s12, 0
    %p53 = por %p51, %p52
    %p54 = scmp.ne.s32.totalorder %s46, %s48
    %p55 = scmp.eq.s32.totalorder %s17, 1
    %p56 = por %p54, %p55
    %p57 = scmp.ne.s32.totalorder %s48, %s49
    %p58 = scmp.eq.s32.totalorder %s17, 0
    %p59 = por %p57, %p58
    %p60 = scmp.ne.s32.totalorder %s48, %s49
    %p61 = scmp.eq.s32.totalorder %s18, 1
    %p62 = por %p60, %p61
    %p64 = scmp.ne.s32.totalorder %s49, %s63
    %p65 = scmp.eq.s32.totalorder %s18, 0
    %p66 = por %p64, %p65
    %s68 = sadd.s32 %s67, 1
    %p71 = scmp.eq.s32.totalorder %s12, 1
    %p72 = scmp.ne.s32.totalorder %s67, %s69
    %p73 = scmp.eq.s32.totalorder %s12, 0
    %p74 = por %p72, %p73
    %p75 = scmp.ne.s32.totalorder %s67, %s69
    %p76 = scmp.eq.s32.totalorder %s17, 1
    %p77 = por %p75, %p76
    %p78 = scmp.ne.s32.totalorder %s69, %s70
    %p79 = scmp.eq.s32.totalorder %s17, 0
    %p80 = por %p78, %p79
    %p81 = scmp.ne.s32.totalorder %s69, %s70
    %p82 = scmp.eq.s32.totalorder %s18, 1
    %p83 = por %p81, %p82
    %p85 = scmp.ne.s32.totalorder %s70, %s84
    %p86 = scmp.eq.s32.totalorder %s18, 0
    %p87 = por %p85, %p86
    %s89 = sadd.s32 %s88, 1
    %p92 = scmp.eq.s32.totalorder %s12, 1
    %p93 = scmp.ne.s32.totalorder %s88, %s90
    %p94 = scmp.eq.s32.totalorder %s12, 0
    %p95 = por %p93, %p94
    %p96 = scmp.ne.s32.totalorder %s88, %s90
    %p97 = scmp.eq.s32.totalorder %s17, 1
    %p98 = por %p96, %p97
    %p99 = scmp.ne.s32.totalorder %s90, %s91
    %p100 = scmp.eq.s32.totalorder %s17, 0
    %p101 = por %p99, %p100
    %p102 = scmp.ne.s32.totalorder %s90, %s91
    %p103 = scmp.eq.s32.totalorder %s18, 1
    %p104 = por %p102, %p103
    %p106 = scmp.ne.s32.totalorder %s91, %s105
    %p107 = scmp.eq.s32.totalorder %s18, 0
    %p108 = por %p106, %p107
    %s110 = sadd.s32 %s109, 1
    %p113 = scmp.eq.s32.totalorder %s12, 1
    %p114 = scmp.ne.s32.totalorder %s109, %s111
    %p115 = scmp.eq.s32.totalorder %s12, 0
    %p116 = por %p114, %p115
    %p117 = scmp.ne.s32.totalorder %s109, %s111
    %p118 = scmp.eq.s32.totalorder %s17, 1
    %p119 = por %p117, %p118
    %p120 = scmp.ne.s32.totalorder %s111, %s112
    %p121 = scmp.eq.s32.totalorder %s17, 0
    %p122 = por %p120, %p121
    %p123 = scmp.ne.s32.totalorder %s111, %s112
    %p124 = scmp.eq.s32.totalorder %s18, 1
    %p125 = por %p123, %p124
    %p127 = scmp.ne.s32.totalorder %s112, %s126
    %p128 = scmp.eq.s32.totalorder %s18, 0
    %p129 = por %p127, %p128
    %s131 = sadd.s32 %s130, 1
    %p134 = scmp.eq.s32.totalorder %s12, 1
    %p135 = scmp.ne.s32.totalorder %s130, %s132
    %p136 = scmp.eq.s32.totalorder %s12, 0
    %p137 = por %p135, %p136
    %p138 = scmp.ne.s32.totalorder %s130, %s132
    %p139 = scmp.eq.s32.totalorder %s17, 1
    %p140 = por %p138, %p139
    %p141 = scmp.ne.s32.totalorder %s132, %s133
    %p142 = scmp.eq.s32.totalorder %s17, 0
    %p143 = por %p141, %p142
    %p144 = scmp.ne.s32.totalorder %s132, %s133
    %p145 = scmp.eq.s32.totalorder %s18, 1
    %p146 = por %p144, %p145
    %p148 = scmp.ne.s32.totalorder %s133, %s147
    %p149 = scmp.eq.s32.totalorder %s18, 0
    %p150 = por %p148, %p149
    %s151 = ssub.s32 %s12, %s19
    %p152 = scmp.eq.s32.totalorder %s151, 0
    %s154 = sadd.s32 %s153, 1
    %s155 = scalar_select %p152, %s153, %s154
    %p158 = pneg %p152
    %p159 = scmp.eq.s32.totalorder %s12, 1
    %p160 = por %p158, %p159
    %p161 = scmp.ne.s32.totalorder %s153, %s156
    %p162 = scmp.eq.s32.totalorder %s12, 0
    %p163 = por %p161, %p162
    %p164 = scmp.ne.s32.totalorder %s153, %s156
    %p165 = scmp.eq.s32.totalorder %s17, 1
    %p166 = por %p164, %p165
    %p167 = scmp.ne.s32.totalorder %s156, %s157
    %p168 = scmp.eq.s32.totalorder %s17, 0
    %p169 = por %p167, %p168
    %p170 = scmp.ne.s32.totalorder %s156, %s157
    %p171 = scmp.eq.s32.totalorder %s18, 1
    %p172 = por %p170, %p171
    %p174 = scmp.ne.s32.totalorder %s157, %s173
    %p175 = scmp.eq.s32.totalorder %s18, 0
    %p176 = por %p174, %p175
    %p177 = scmp.le.s32.totalorder 1, %s12
    %p178 = scmp.lt.s32.totalorder %s12, 3
    %p179 = pnand %p177, %p178
    %p180 = pneg %p179
    // Predicated region
    $region9: #{features_processing.1} parent=5 // pred_check
      _
    $region10: #{features_processing.1} parent=5 // pred_check_branch
      %182 = sbr.rel (%p179) target = $region12
    $region11: #{features_processing.1} parent=5 // pred_region
      %s183 = ssub.s32 %s12, 1
      // Predicated region
      $region13: #{features_processing.1} parent=11 // pred_check
        %p184 = pneg %p59
      $region14: #{features_processing.1} parent=11 // pred_check_branch
        %186 = sbr.rel (%p184) target = $region16
      $region15: #{features_processing.1} parent=11 // pred_region
        _
      $region16: #{features_processing.1} parent=11 // pred_fallthru
        _
      // Predicated region
      $region17: #{features_processing.1} parent=11 // pred_check
        %p187 = pneg %p80
      $region18: #{features_processing.1} parent=11 // pred_check_branch
        %189 = sbr.rel (%p187) target = $region20
      $region19: #{features_processing.1} parent=11 // pred_region
        _
      $region20: #{features_processing.1} parent=11 // pred_fallthru
        _
      // Predicated region
      $region21: #{features_processing.1} parent=11 // pred_check
        %p190 = pneg %p101
      $region22: #{features_processing.1} parent=11 // pred_check_branch
        %192 = sbr.rel (%p190) target = $region24
      $region23: #{features_processing.1} parent=11 // pred_region
        _
      $region24: #{features_processing.1} parent=11 // pred_fallthru
        _
      // Predicated region
      $region25: #{features_processing.1} parent=11 // pred_check
        %p193 = pneg %p122
      $region26: #{features_processing.1} parent=11 // pred_check_branch
        %195 = sbr.rel (%p193) target = $region28
      $region27: #{features_processing.1} parent=11 // pred_region
        _
      $region28: #{features_processing.1} parent=11 // pred_fallthru
        _
      // Predicated region
      $region29: #{features_processing.1} parent=11 // pred_check
        %p196 = pneg %p143
      $region30: #{features_processing.1} parent=11 // pred_check_branch
        %198 = sbr.rel (%p196) target = $region32
      $region31: #{features_processing.1} parent=11 // pred_region
        _
      $region32: #{features_processing.1} parent=11 // pred_fallthru
        _
    $region12: #{features_processing.1} parent=5 // pred_fallthru
      _
    %p199 = scmp.lt.s32.totalorder %s12, 2
    // Predicated region
    $region33: #{features_processing.1} parent=5 // pred_check
      %p200 = pneg %p199
    $region34: #{features_processing.1} parent=5 // pred_check_branch
      %202 = sbr.rel (%p200) target = $region36
    $region35: #{features_processing.1} parent=5 // pred_region
      // Predicated region
      $region37: #{features_processing.1} parent=35 // pred_check
        %p203 = pneg %p32
      $region38: #{features_processing.1} parent=35 // pred_check_branch
        %205 = sbr.rel (%p203) target = $region40
      $region39: #{features_processing.1} parent=35 // pred_region
        %p206 = scmp.lt.s32.totalorder %s12, 1
        %s207 = scalar_select %p206, %s12, 1
        %s208 = smul.addr %s207, 2
        %s209 = smul.addr %s208, 8
        %s210 = scalar_lea.vmem %s0, %s209
      $region40: #{features_processing.1} parent=35 // pred_fallthru
        _
    $region36: #{features_processing.1} parent=5 // pred_fallthru
      _
    %p211 = scmp.le.s32.totalorder 1, %s12
    %p212 = scmp.lt.s32.totalorder %s12, 3
    %p213 = pnand %p211, %p212
    %p214 = pneg %p213
    // Predicated region
    $region41: #{features_processing.1} parent=5 // pred_check
      _
    $region42: #{features_processing.1} parent=5 // pred_check_branch
      %216 = sbr.rel (%p213) target = $region44
    $region43: #{features_processing.1} parent=5 // pred_region
      %s217 = ssub.s32 %s12, 1
      %p218 = scmp.lt.s32.totalorder %s17, 1
      %s219 = scalar_select %p218, %s17, 1
      %s220 = smul.addr %s219, 2
      %s221 = smul.addr %s220, 8
      %s222 = scalar_lea.vmem %s0, %s221
      %p223 = pneg %p38
      %p224 = pneg %p35
      %p225 = pneg %p59
      %p226 = pneg %p56
      %p227 = pneg %p80
      %p228 = pneg %p77
      %p229 = pneg %p101
      %p230 = pneg %p98
      %p231 = pneg %p122
      %p232 = pneg %p119
      %p233 = pneg %p143
      %p234 = pneg %p140
      %p235 = pneg %p169
      %p236 = pneg %p166
      %p237 = scmp.lt.s32.totalorder %s17, 1
      %s238 = scalar_select %p237, %s17, 1
      %s239 = smul.addr %s238, 2
      %s240 = smul.addr %s239, 8
      %s241 = scalar_lea.vmem %s6, %s240
      %p242 = scmp.lt.s32.totalorder %s17, 1
      %s243 = scalar_select %p242, %s17, 1
      %s244 = smul.addr %s243, 2
      %s245 = smul.addr %s244, 8
      %s246 = scalar_lea.vmem %s0, %s245
      %p247 = scmp.lt.s32.totalorder %s17, 1
      %s248 = scalar_select %p247, %s17, 1
      %s249 = smul.addr %s248, 2
      %s250 = smul.addr %s249, 8
      %s251 = scalar_lea.vmem %s6, %s250
      %v252 = vld [vmem:[%s246] sm:$0xff]
      %v253 = vld [vmem:[%s246 + $0x8] sm:$0xff]
      %v254 = vld [vmem:[%s2] sm:$0x1]
      %v255 = vld [vmem:[%s1] sm:$0xff]
      %v256 = vld [vmem:[%s1 + $0x8] sm:$0xff]
      %v257 = vld [vmem:[%s1 + $0x10] sm:$0xff]
      %v258 = vld [vmem:[%s1 + $0x18] sm:$0xff]
      %v259 = vld [vmem:[%s1 + $0x20] sm:$0xff]
      %v260 = vld [vmem:[%s1 + $0x28] sm:$0xff]
      %v261 = vld [vmem:[%s1 + $0x30] sm:$0xff]
      %v262 = vld [vmem:[%s1 + $0x38] sm:$0xff]
      %vm263 = vcmask 523264
      %v265 = vsel %vm263, %v252, 0
      %v268 = vsel %vm263, %v253, 0
      %270 = vmatprep.subr.mxu0 0.0
      %271 = vmatpush1.msra.mxu0 0.0
      %272 = vmatprep.subr.mxu0 0.0
      %273 = vmatpush1.msra.mxu0 0.0
      %274 = vmatprep.subr.mxu0 0.0
      %275 = vmatpush1.msra.mxu0 0.0
      %276 = vmatprep.subr.mxu0 0.0
      %277 = vmatpush1.msra.mxu0 0.0
      %278 = vmatprep.subr.mxu0 0.0
      %279 = vmatpush1.msra.mxu0 0.0
      %280 = vmatprep.subr.mxu0 0.0
      %281 = vmatpush1.msra.mxu0 0.0
      %282 = vmatprep.subr.mxu0 0.0
      %283 = vmatpush1.msra.mxu0 0.0
      %284 = vmatprep.subr.mxu0 0.0
      %285 = vmatpush1.msra.mxu0 0.0
      %286 = vmatprep.subr.mxu0 0.0
      %287 = vmatpush1.msra.mxu0 %v262
      %288 = vmatprep.subr.mxu0 0.0
      %289 = vmatpush1.msra.mxu0 %v261
      %290 = vmatprep.subr.mxu0 0.0
      %291 = vmatpush1.msra.mxu0 %v260
      %292 = vmatprep.subr.mxu0 0.0
      %293 = vmatpush1.msra.mxu0 %v259
      %294 = vmatprep.subr.mxu0 0.0
      %295 = vmatpush1.msra.mxu0 %v258
      %296 = vmatprep.subr.mxu0 0.0
      %297 = vmatpush1.msra.mxu0 %v257
      %298 = vmatprep.subr.mxu0 0.0
      %299 = vmatpush1.msra.mxu0 %v256
      %300 = vmatprep.subr.mxu0 0.0
      %301 = vmatpush1.msra.mxu0 %v255
      %302 = vmatprep.subr.mxu0 0.0
      %303 = vmatpush2.msra.mxu0 0.0
      %304 = vmatprep.subr.mxu0 0.0
      %305 = vmatpush2.msra.mxu0 0.0
      %306 = vmatprep.subr.mxu0 0.0
      %307 = vmatpush2.msra.mxu0 0.0
      %308 = vmatprep.subr.mxu0 0.0
      %309 = vmatpush2.msra.mxu0 0.0
      %310 = vmatprep.subr.mxu0 0.0
      %311 = vmatpush2.msra.mxu0 0.0
      %312 = vmatprep.subr.mxu0 0.0
      %313 = vmatpush2.msra.mxu0 0.0
      %314 = vmatprep.subr.mxu0 0.0
      %315 = vmatpush2.msra.mxu0 0.0
      %316 = vmatprep.subr.mxu0 0.0
      %317 = vmatpush2.msra.mxu0 0.0
      %318 = vmatprep.subr.mxu0 0.0
      %319 = vmatpush2.msra.mxu0 0.0
      %320 = vmatprep.subr.mxu0 0.0
      %321 = vmatpush2.msra.mxu0 0.0
      %322 = vmatprep.subr.mxu0 0.0
      %323 = vmatpush2.msra.mxu0 0.0
      %324 = vmatprep.subr.mxu0 0.0
      %325 = vmatpush2.msra.mxu0 0.0
      %326 = vmatprep.subr.mxu0 0.0
      %327 = vmatpush2.msra.mxu0 0.0
      %328 = vmatprep.subr.mxu0 0.0
      %329 = vmatpush2.msra.mxu0 0.0
      %330 = vmatprep.subr.mxu0 0.0
      %331 = vmatpush2.msra.mxu0 0.0
      %332 = vmatprep.subr.mxu0 0.0
      %333 = vmatpush2.msra.mxu0 0.0
      %334 = vmatprep.mubr.f32.mxu0 0.0
      %335 = vmatmul.mubr.f32.gmra.mxu0 %v265
      %v336 = vpop.f32.mrf.mxu0
      %v337 = vadd.f32 0.0, %v336
      %v338 = vpop.f32.mrf.mxu0
      %339 = vmatprep.mubr.f32.mxu0 0.0
      %340 = vmatmul.mubr.f32.gmra.mxu0 %v268
      %v341 = vpop.f32.mrf.mxu0
      %v342 = vadd.f32 0.0, %v341
      %v343 = vpop.f32.mrf.mxu0
      %344 = vdwg.mxu0
      %s345 = scalar_lea.vmem %s1, 64
      %v346 = vld [vmem:[%s345] sm:$0xff]
      %v347 = vld [vmem:[%s345 + $0x8] sm:$0xff]
      %v348 = vld [vmem:[%s345 + $0x10] sm:$0xff]
      %v349 = vld [vmem:[%s345 + $0x18] sm:$0xff]
      %v350 = vld [vmem:[%s345 + $0x20] sm:$0xff]
      %v351 = vld [vmem:[%s345 + $0x28] sm:$0xff]
      %v352 = vld [vmem:[%s345 + $0x30] sm:$0xff]
      %v353 = vld [vmem:[%s345 + $0x38] sm:$0xff]
      %354 = vmatprep.subr.mxu0 0.0
      %355 = vmatpush1.msra.mxu0 0.0
      %356 = vmatprep.subr.mxu0 0.0
      %357 = vmatpush1.msra.mxu0 0.0
      %358 = vmatprep.subr.mxu0 0.0
      %359 = vmatpush1.msra.mxu0 0.0
      %360 = vmatprep.subr.mxu0 0.0
      %361 = vmatpush1.msra.mxu0 0.0
      %362 = vmatprep.subr.mxu0 0.0
      %363 = vmatpush1.msra.mxu0 0.0
      %364 = vmatprep.subr.mxu0 0.0
      %365 = vmatpush1.msra.mxu0 0.0
      %366 = vmatprep.subr.mxu0 0.0
      %367 = vmatpush1.msra.mxu0 0.0
      %368 = vmatprep.subr.mxu0 0.0
      %369 = vmatpush1.msra.mxu0 0.0
      %370 = vmatprep.subr.mxu0 0.0
      %371 = vmatpush1.msra.mxu0 %v353
      %372 = vmatprep.subr.mxu0 0.0
      %373 = vmatpush1.msra.mxu0 %v352
      %374 = vmatprep.subr.mxu0 0.0
      %375 = vmatpush1.msra.mxu0 %v351
      %376 = vmatprep.subr.mxu0 0.0
      %377 = vmatpush1.msra.mxu0 %v350
      %378 = vmatprep.subr.mxu0 0.0
      %379 = vmatpush1.msra.mxu0 %v349
      %380 = vmatprep.subr.mxu0 0.0
      %381 = vmatpush1.msra.mxu0 %v348
      %382 = vmatprep.subr.mxu0 0.0
      %383 = vmatpush1.msra.mxu0 %v347
      %384 = vmatprep.subr.mxu0 0.0
      %385 = vmatpush1.msra.mxu0 %v346
      %386 = vmatprep.subr.mxu0 0.0
      %387 = vmatpush2.msra.mxu0 0.0
      %388 = vmatprep.subr.mxu0 0.0
      %389 = vmatpush2.msra.mxu0 0.0
      %390 = vmatprep.subr.mxu0 0.0
      %391 = vmatpush2.msra.mxu0 0.0
      %392 = vmatprep.subr.mxu0 0.0
      %393 = vmatpush2.msra.mxu0 0.0
      %394 = vmatprep.subr.mxu0 0.0
      %395 = vmatpush2.msra.mxu0 0.0
      %396 = vmatprep.subr.mxu0 0.0
      %397 = vmatpush2.msra.mxu0 0.0
      %398 = vmatprep.subr.mxu0 0.0
      %399 = vmatpush2.msra.mxu0 0.0
      %400 = vmatprep.subr.mxu0 0.0
      %401 = vmatpush2.msra.mxu0 0.0
      %402 = vmatprep.subr.mxu0 0.0
      %403 = vmatpush2.msra.mxu0 0.0
      %404 = vmatprep.subr.mxu0 0.0
      %405 = vmatpush2.msra.mxu0 0.0
      %406 = vmatprep.subr.mxu0 0.0
      %407 = vmatpush2.msra.mxu0 0.0
      %408 = vmatprep.subr.mxu0 0.0
      %409 = vmatpush2.msra.mxu0 0.0
      %410 = vmatprep.subr.mxu0 0.0
      %411 = vmatpush2.msra.mxu0 0.0
      %412 = vmatprep.subr.mxu0 0.0
      %413 = vmatpush2.msra.mxu0 0.0
      %414 = vmatprep.subr.mxu0 0.0
      %415 = vmatpush2.msra.mxu0 0.0
      %416 = vmatprep.subr.mxu0 0.0
      %417 = vmatpush2.msra.mxu0 0.0
      %418 = vmatprep.mubr.f32.mxu0 0.0
      %419 = vmatmul.mubr.f32.gmra.mxu0 %v265
      %v420 = vpop.f32.mrf.mxu0
      %v421 = vadd.f32 0.0, %v420
      %v422 = vpop.f32.mrf.mxu0
      %423 = vmatprep.mubr.f32.mxu0 0.0
      %424 = vmatmul.mubr.f32.gmra.mxu0 %v268
      %v425 = vpop.f32.mrf.mxu0
      %v426 = vadd.f32 0.0, %v425
      %v427 = vpop.f32.mrf.mxu0
      %428 = vdwg.mxu0
      %s429 = scalar_lea.vmem %s1, 128
      %v430 = vld [vmem:[%s429] sm:$0xff]
      %v431 = vld [vmem:[%s429 + $0x8] sm:$0xff]
      %v432 = vld [vmem:[%s429 + $0x10] sm:$0xff]
      %v433 = vld [vmem:[%s429 + $0x18] sm:$0xff]
      %v434 = vld [vmem:[%s429 + $0x20] sm:$0xff]
      %v435 = vld [vmem:[%s429 + $0x28] sm:$0xff]
      %v436 = vld [vmem:[%s429 + $0x30] sm:$0xff]
      %v437 = vld [vmem:[%s429 + $0x38] sm:$0xff]
      %438 = vmatprep.subr.mxu0 0.0
      %439 = vmatpush1.msra.mxu0 0.0
      %440 = vmatprep.subr.mxu0 0.0
      %441 = vmatpush1.msra.mxu0 0.0
      %442 = vmatprep.subr.mxu0 0.0
      %443 = vmatpush1.msra.mxu0 0.0
      %444 = vmatprep.subr.mxu0 0.0
      %445 = vmatpush1.msra.mxu0 0.0
      %446 = vmatprep.subr.mxu0 0.0
      %447 = vmatpush1.msra.mxu0 0.0
      %448 = vmatprep.subr.mxu0 0.0
      %449 = vmatpush1.msra.mxu0 0.0
      %450 = vmatprep.subr.mxu0 0.0
      %451 = vmatpush1.msra.mxu0 0.0
      %452 = vmatprep.subr.mxu0 0.0
      %453 = vmatpush1.msra.mxu0 0.0
      %454 = vmatprep.subr.mxu0 0.0
      %455 = vmatpush1.msra.mxu0 %v437
      %456 = vmatprep.subr.mxu0 0.0
      %457 = vmatpush1.msra.mxu0 %v436
      %458 = vmatprep.subr.mxu0 0.0
      %459 = vmatpush1.msra.mxu0 %v435
      %460 = vmatprep.subr.mxu0 0.0
      %461 = vmatpush1.msra.mxu0 %v434
      %462 = vmatprep.subr.mxu0 0.0
      %463 = vmatpush1.msra.mxu0 %v433
      %464 = vmatprep.subr.mxu0 0.0
      %465 = vmatpush1.msra.mxu0 %v432
      %466 = vmatprep.subr.mxu0 0.0
      %467 = vmatpush1.msra.mxu0 %v431
      %468 = vmatprep.subr.mxu0 0.0
      %469 = vmatpush1.msra.mxu0 %v430
      %470 = vmatprep.subr.mxu0 0.0
      %471 = vmatpush2.msra.mxu0 0.0
      %472 = vmatprep.subr.mxu0 0.0
      %473 = vmatpush2.msra.mxu0 0.0
      %474 = vmatprep.subr.mxu0 0.0
      %475 = vmatpush2.msra.mxu0 0.0
      %476 = vmatprep.subr.mxu0 0.0
      %477 = vmatpush2.msra.mxu0 0.0
      %478 = vmatprep.subr.mxu0 0.0
      %479 = vmatpush2.msra.mxu0 0.0
      %480 = vmatprep.subr.mxu0 0.0
      %481 = vmatpush2.msra.mxu0 0.0
      %482 = vmatprep.subr.mxu0 0.0
      %483 = vmatpush2.msra.mxu0 0.0
      %484 = vmatprep.subr.mxu0 0.0
      %485 = vmatpush2.msra.mxu0 0.0
      %486 = vmatprep.subr.mxu0 0.0
      %487 = vmatpush2.msra.mxu0 0.0
      %488 = vmatprep.subr.mxu0 0.0
      %489 = vmatpush2.msra.mxu0 0.0
      %490 = vmatprep.subr.mxu0 0.0
      %491 = vmatpush2.msra.mxu0 0.0
      %492 = vmatprep.subr.mxu0 0.0
      %493 = vmatpush2.msra.mxu0 0.0
      %494 = vmatprep.subr.mxu0 0.0
      %495 = vmatpush2.msra.mxu0 0.0
      %496 = vmatprep.subr.mxu0 0.0
      %497 = vmatpush2.msra.mxu0 0.0
      %498 = vmatprep.subr.mxu0 0.0
      %499 = vmatpush2.msra.mxu0 0.0
      %500 = vmatprep.subr.mxu0 0.0
      %501 = vmatpush2.msra.mxu0 0.0
      %502 = vmatprep.mubr.f32.mxu0 0.0
      %503 = vmatmul.mubr.f32.gmra.mxu0 %v265
      %v504 = vpop.f32.mrf.mxu0
      %v505 = vadd.f32 0.0, %v504
      %v506 = vpop.f32.mrf.mxu0
      %507 = vmatprep.mubr.f32.mxu0 0.0
      %508 = vmatmul.mubr.f32.gmra.mxu0 %v268
      %v509 = vpop.f32.mrf.mxu0
      %v510 = vadd.f32 0.0, %v509
      %v511 = vpop.f32.mrf.mxu0
      %512 = vdwg.mxu0
      %vm515 = vcmask 1040384
      %v516 = vrot.slane %v337, 7
      %v517 = vrot.slane %v342, 7
      %v518 = vsel %vm515, %v516, %v517
      %v521 = vsel %vm515, 0.0, %v516
      %vm524 = vcmask 1046528
      %v525 = vrot.slane %v505, 1
      %v526 = vrot.slane %v510, 1
      %v527 = vsel %vm524, %v525, %v526
      %v530 = vsel %vm524, %v526, 0.0
      %v531 = vadd.f32 %v521, %v421
      %v532 = vadd.f32 %v518, %v426
      %v533 = vadd.f32 %v531, %v527
      %v534 = vadd.f32 %v532, %v530
      %v536 = vlaneseq
      %v537 = vshrl.u32 %v536, 7
      %v538 = vsub.s32 0, %v537
      %v539 = vrot.slane %v254, %v538
      %v541 = vadd.f32 %v533, %v539
      %v542 = vadd.f32 %v534, %v539
      %v543 = vmax.f32 %v541, 0.0
      %v544 = vmax.f32 %v542, 0.0
      %v545 = vld [vmem:[%s4] sm:$0x1]
      %v546 = vld [vmem:[%s3] sm:$0xff]
      %v547 = vld [vmem:[%s3 + $0x8] sm:$0xff]
      %v548 = vld [vmem:[%s3 + $0x10] sm:$0xff]
      %v549 = vld [vmem:[%s3 + $0x18] sm:$0xff]
      %v550 = vld [vmem:[%s3 + $0x20] sm:$0xff]
      %v551 = vld [vmem:[%s3 + $0x28] sm:$0xff]
      %v552 = vld [vmem:[%s3 + $0x30] sm:$0xff]
      %v553 = vld [vmem:[%s3 + $0x38] sm:$0xff]
      %v554 = vld [vmem:[%s3 + $0x40] sm:$0xff]
      %v555 = vld [vmem:[%s3 + $0x48] sm:$0xff]
      %v556 = vld [vmem:[%s3 + $0x50] sm:$0xff]
      %v557 = vld [vmem:[%s3 + $0x58] sm:$0xff]
      %v558 = vld [vmem:[%s3 + $0x60] sm:$0xff]
      %v559 = vld [vmem:[%s3 + $0x68] sm:$0xff]
      %v560 = vld [vmem:[%s3 + $0x70] sm:$0xff]
      %v561 = vld [vmem:[%s3 + $0x78] sm:$0xff]
      %562 = vmatprep.subr.mxu0 0.0
      %563 = vmatpush1.msra.mxu0 %v561
      %564 = vmatprep.subr.mxu0 0.0
      %565 = vmatpush1.msra.mxu0 %v560
      %566 = vmatprep.subr.mxu0 0.0
      %567 = vmatpush1.msra.mxu0 %v559
      %568 = vmatprep.subr.mxu0 0.0
      %569 = vmatpush1.msra.mxu0 %v558
      %570 = vmatprep.subr.mxu0 0.0
      %571 = vmatpush1.msra.mxu0 %v557
      %572 = vmatprep.subr.mxu0 0.0
      %573 = vmatpush1.msra.mxu0 %v556
      %574 = vmatprep.subr.mxu0 0.0
      %575 = vmatpush1.msra.mxu0 %v555
      %576 = vmatprep.subr.mxu0 0.0
      %577 = vmatpush1.msra.mxu0 %v554
      %578 = vmatprep.subr.mxu0 0.0
      %579 = vmatpush1.msra.mxu0 %v553
      %580 = vmatprep.subr.mxu0 0.0
      %581 = vmatpush1.msra.mxu0 %v552
      %582 = vmatprep.subr.mxu0 0.0
      %583 = vmatpush1.msra.mxu0 %v551
      %584 = vmatprep.subr.mxu0 0.0
      %585 = vmatpush1.msra.mxu0 %v550
      %586 = vmatprep.subr.mxu0 0.0
      %587 = vmatpush1.msra.mxu0 %v549
      %588 = vmatprep.subr.mxu0 0.0
      %589 = vmatpush1.msra.mxu0 %v548
      %590 = vmatprep.subr.mxu0 0.0
      %591 = vmatpush1.msra.mxu0 %v547
      %592 = vmatprep.subr.mxu0 0.0
      %593 = vmatpush1.msra.mxu0 %v546
      %594 = vmatprep.subr.mxu0 0.0
      %595 = vmatpush2.msra.mxu0 0.0
      %596 = vmatprep.subr.mxu0 0.0
      %597 = vmatpush2.msra.mxu0 0.0
      %598 = vmatprep.subr.mxu0 0.0
      %599 = vmatpush2.msra.mxu0 0.0
      %600 = vmatprep.subr.mxu0 0.0
      %601 = vmatpush2.msra.mxu0 0.0
      %602 = vmatprep.subr.mxu0 0.0
      %603 = vmatpush2.msra.mxu0 0.0
      %604 = vmatprep.subr.mxu0 0.0
      %605 = vmatpush2.msra.mxu0 0.0
      %606 = vmatprep.subr.mxu0 0.0
      %607 = vmatpush2.msra.mxu0 0.0
      %608 = vmatprep.subr.mxu0 0.0
      %609 = vmatpush2.msra.mxu0 0.0
      %610 = vmatprep.subr.mxu0 0.0
      %611 = vmatpush2.msra.mxu0 0.0
      %612 = vmatprep.subr.mxu0 0.0
      %613 = vmatpush2.msra.mxu0 0.0
      %614 = vmatprep.subr.mxu0 0.0
      %615 = vmatpush2.msra.mxu0 0.0
      %616 = vmatprep.subr.mxu0 0.0
      %617 = vmatpush2.msra.mxu0 0.0
      %618 = vmatprep.subr.mxu0 0.0
      %619 = vmatpush2.msra.mxu0 0.0
      %620 = vmatprep.subr.mxu0 0.0
      %621 = vmatpush2.msra.mxu0 0.0
      %622 = vmatprep.subr.mxu0 0.0
      %623 = vmatpush2.msra.mxu0 0.0
      %624 = vmatprep.subr.mxu0 0.0
      %625 = vmatpush2.msra.mxu0 0.0
      %626 = vmatprep.mubr.f32.mxu0 0.0
      %627 = vmatmul.mubr.f32.gmra.mxu0 %v543
      %v628 = vpop.f32.mrf.mxu0
      %v629 = vadd.f32 0.0, %v628
      %v630 = vpop.f32.mrf.mxu0
      %631 = vmatprep.mubr.f32.mxu0 0.0
      %632 = vmatmul.mubr.f32.gmra.mxu0 %v544
      %v633 = vpop.f32.mrf.mxu0
      %v634 = vadd.f32 0.0, %v633
      %v635 = vpop.f32.mrf.mxu0
      %636 = vdwg.mxu0
      %s637 = scalar_lea.vmem %s3, 128
      %v638 = vld [vmem:[%s637] sm:$0xff]
      %v639 = vld [vmem:[%s637 + $0x8] sm:$0xff]
      %v640 = vld [vmem:[%s637 + $0x10] sm:$0xff]
      %v641 = vld [vmem:[%s637 + $0x18] sm:$0xff]
      %v642 = vld [vmem:[%s637 + $0x20] sm:$0xff]
      %v643 = vld [vmem:[%s637 + $0x28] sm:$0xff]
      %v644 = vld [vmem:[%s637 + $0x30] sm:$0xff]
      %v645 = vld [vmem:[%s637 + $0x38] sm:$0xff]
      %v646 = vld [vmem:[%s637 + $0x40] sm:$0xff]
      %v647 = vld [vmem:[%s637 + $0x48] sm:$0xff]
      %v648 = vld [vmem:[%s637 + $0x50] sm:$0xff]
      %v649 = vld [vmem:[%s637 + $0x58] sm:$0xff]
      %v650 = vld [vmem:[%s637 + $0x60] sm:$0xff]
      %v651 = vld [vmem:[%s637 + $0x68] sm:$0xff]
      %v652 = vld [vmem:[%s637 + $0x70] sm:$0xff]
      %v653 = vld [vmem:[%s637 + $0x78] sm:$0xff]
      %654 = vmatprep.subr.mxu0 0.0
      %655 = vmatpush1.msra.mxu0 %v653
      %656 = vmatprep.subr.mxu0 0.0
      %657 = vmatpush1.msra.mxu0 %v652
      %658 = vmatprep.subr.mxu0 0.0
      %659 = vmatpush1.msra.mxu0 %v651
      %660 = vmatprep.subr.mxu0 0.0
      %661 = vmatpush1.msra.mxu0 %v650
      %662 = vmatprep.subr.mxu0 0.0
      %663 = vmatpush1.msra.mxu0 %v649
      %664 = vmatprep.subr.mxu0 0.0
      %665 = vmatpush1.msra.mxu0 %v648
      %666 = vmatprep.subr.mxu0 0.0
      %667 = vmatpush1.msra.mxu0 %v647
      %668 = vmatprep.subr.mxu0 0.0
      %669 = vmatpush1.msra.mxu0 %v646
      %670 = vmatprep.subr.mxu0 0.0
      %671 = vmatpush1.msra.mxu0 %v645
      %672 = vmatprep.subr.mxu0 0.0
      %673 = vmatpush1.msra.mxu0 %v644
      %674 = vmatprep.subr.mxu0 0.0
      %675 = vmatpush1.msra.mxu0 %v643
      %676 = vmatprep.subr.mxu0 0.0
      %677 = vmatpush1.msra.mxu0 %v642
      %678 = vmatprep.subr.mxu0 0.0
      %679 = vmatpush1.msra.mxu0 %v641
      %680 = vmatprep.subr.mxu0 0.0
      %681 = vmatpush1.msra.mxu0 %v640
      %682 = vmatprep.subr.mxu0 0.0
      %683 = vmatpush1.msra.mxu0 %v639
      %684 = vmatprep.subr.mxu0 0.0
      %685 = vmatpush1.msra.mxu0 %v638
      %686 = vmatprep.subr.mxu0 0.0
      %687 = vmatpush2.msra.mxu0 0.0
      %688 = vmatprep.subr.mxu0 0.0
      %689 = vmatpush2.msra.mxu0 0.0
      %690 = vmatprep.subr.mxu0 0.0
      %691 = vmatpush2.msra.mxu0 0.0
      %692 = vmatprep.subr.mxu0 0.0
      %693 = vmatpush2.msra.mxu0 0.0
      %694 = vmatprep.subr.mxu0 0.0
      %695 = vmatpush2.msra.mxu0 0.0
      %696 = vmatprep.subr.mxu0 0.0
      %697 = vmatpush2.msra.mxu0 0.0
      %698 = vmatprep.subr.mxu0 0.0
      %699 = vmatpush2.msra.mxu0 0.0
      %700 = vmatprep.subr.mxu0 0.0
      %701 = vmatpush2.msra.mxu0 0.0
      %702 = vmatprep.subr.mxu0 0.0
      %703 = vmatpush2.msra.mxu0 0.0
      %704 = vmatprep.subr.mxu0 0.0
      %705 = vmatpush2.msra.mxu0 0.0
      %706 = vmatprep.subr.mxu0 0.0
      %707 = vmatpush2.msra.mxu0 0.0
      %708 = vmatprep.subr.mxu0 0.0
      %709 = vmatpush2.msra.mxu0 0.0
      %710 = vmatprep.subr.mxu0 0.0
      %711 = vmatpush2.msra.mxu0 0.0
      %712 = vmatprep.subr.mxu0 0.0
      %713 = vmatpush2.msra.mxu0 0.0
      %714 = vmatprep.subr.mxu0 0.0
      %715 = vmatpush2.msra.mxu0 0.0
      %716 = vmatprep.subr.mxu0 0.0
      %717 = vmatpush2.msra.mxu0 0.0
      %718 = vmatprep.mubr.f32.mxu0 0.0
      %719 = vmatmul.mubr.f32.gmra.mxu0 %v543
      %v720 = vpop.f32.mrf.mxu0
      %v721 = vadd.f32 0.0, %v720
      %v722 = vpop.f32.mrf.mxu0
      %723 = vmatprep.mubr.f32.mxu0 0.0
      %724 = vmatmul.mubr.f32.gmra.mxu0 %v544
      %v725 = vpop.f32.mrf.mxu0
      %v726 = vadd.f32 0.0, %v725
      %v727 = vpop.f32.mrf.mxu0
      %728 = vdwg.mxu0
      %s729 = scalar_lea.vmem %s3, 256
      %v730 = vld [vmem:[%s729] sm:$0xff]
      %v731 = vld [vmem:[%s729 + $0x8] sm:$0xff]
      %v732 = vld [vmem:[%s729 + $0x10] sm:$0xff]
      %v733 = vld [vmem:[%s729 + $0x18] sm:$0xff]
      %v734 = vld [vmem:[%s729 + $0x20] sm:$0xff]
      %v735 = vld [vmem:[%s729 + $0x28] sm:$0xff]
      %v736 = vld [vmem:[%s729 + $0x30] sm:$0xff]
      %v737 = vld [vmem:[%s729 + $0x38] sm:$0xff]
      %v738 = vld [vmem:[%s729 + $0x40] sm:$0xff]
      %v739 = vld [vmem:[%s729 + $0x48] sm:$0xff]
      %v740 = vld [vmem:[%s729 + $0x50] sm:$0xff]
      %v741 = vld [vmem:[%s729 + $0x58] sm:$0xff]
      %v742 = vld [vmem:[%s729 + $0x60] sm:$0xff]
      %v743 = vld [vmem:[%s729 + $0x68] sm:$0xff]
      %v744 = vld [vmem:[%s729 + $0x70] sm:$0xff]
      %v745 = vld [vmem:[%s729 + $0x78] sm:$0xff]
      %746 = vmatprep.subr.mxu0 0.0
      %747 = vmatpush1.msra.mxu0 %v745
      %748 = vmatprep.subr.mxu0 0.0
      %749 = vmatpush1.msra.mxu0 %v744
      %750 = vmatprep.subr.mxu0 0.0
      %751 = vmatpush1.msra.mxu0 %v743
      %752 = vmatprep.subr.mxu0 0.0
      %753 = vmatpush1.msra.mxu0 %v742
      %754 = vmatprep.subr.mxu0 0.0
      %755 = vmatpush1.msra.mxu0 %v741
      %756 = vmatprep.subr.mxu0 0.0
      %757 = vmatpush1.msra.mxu0 %v740
      %758 = vmatprep.subr.mxu0 0.0
      %759 = vmatpush1.msra.mxu0 %v739
      %760 = vmatprep.subr.mxu0 0.0
      %761 = vmatpush1.msra.mxu0 %v738
      %762 = vmatprep.subr.mxu0 0.0
      %763 = vmatpush1.msra.mxu0 %v737
      %764 = vmatprep.subr.mxu0 0.0
      %765 = vmatpush1.msra.mxu0 %v736
      %766 = vmatprep.subr.mxu0 0.0
      %767 = vmatpush1.msra.mxu0 %v735
      %768 = vmatprep.subr.mxu0 0.0
      %769 = vmatpush1.msra.mxu0 %v734
      %770 = vmatprep.subr.mxu0 0.0
      %771 = vmatpush1.msra.mxu0 %v733
      %772 = vmatprep.subr.mxu0 0.0
      %773 = vmatpush1.msra.mxu0 %v732
      %774 = vmatprep.subr.mxu0 0.0
      %775 = vmatpush1.msra.mxu0 %v731
      %776 = vmatprep.subr.mxu0 0.0
      %777 = vmatpush1.msra.mxu0 %v730
      %778 = vmatprep.subr.mxu0 0.0
      %779 = vmatpush2.msra.mxu0 0.0
      %780 = vmatprep.subr.mxu0 0.0
      %781 = vmatpush2.msra.mxu0 0.0
      %782 = vmatprep.subr.mxu0 0.0
      %783 = vmatpush2.msra.mxu0 0.0
      %784 = vmatprep.subr.mxu0 0.0
      %785 = vmatpush2.msra.mxu0 0.0
      %786 = vmatprep.subr.mxu0 0.0
      %787 = vmatpush2.msra.mxu0 0.0
      %788 = vmatprep.subr.mxu0 0.0
      %789 = vmatpush2.msra.mxu0 0.0
      %790 = vmatprep.subr.mxu0 0.0
      %791 = vmatpush2.msra.mxu0 0.0
      %792 = vmatprep.subr.mxu0 0.0
      %793 = vmatpush2.msra.mxu0 0.0
      %794 = vmatprep.subr.mxu0 0.0
      %795 = vmatpush2.msra.mxu0 0.0
      %796 = vmatprep.subr.mxu0 0.0
      %797 = vmatpush2.msra.mxu0 0.0
      %798 = vmatprep.subr.mxu0 0.0
      %799 = vmatpush2.msra.mxu0 0.0
      %800 = vmatprep.subr.mxu0 0.0
      %801 = vmatpush2.msra.mxu0 0.0
      %802 = vmatprep.subr.mxu0 0.0
      %803 = vmatpush2.msra.mxu0 0.0
      %804 = vmatprep.subr.mxu0 0.0
      %805 = vmatpush2.msra.mxu0 0.0
      %806 = vmatprep.subr.mxu0 0.0
      %807 = vmatpush2.msra.mxu0 0.0
      %808 = vmatprep.subr.mxu0 0.0
      %809 = vmatpush2.msra.mxu0 0.0
      %810 = vmatprep.mubr.f32.mxu0 0.0
      %811 = vmatmul.mubr.f32.gmra.mxu0 %v543
      %v812 = vpop.f32.mrf.mxu0
      %v813 = vadd.f32 0.0, %v812
      %v814 = vpop.f32.mrf.mxu0
      %815 = vmatprep.mubr.f32.mxu0 0.0
      %816 = vmatmul.mubr.f32.gmra.mxu0 %v544
      %v817 = vpop.f32.mrf.mxu0
      %v818 = vadd.f32 0.0, %v817
      %v819 = vpop.f32.mrf.mxu0
      %820 = vdwg.mxu0
      %v823 = vrot.slane %v629, 7
      %v824 = vrot.slane %v634, 7
      %v825 = vsel %vm515, %v823, %v824
      %v828 = vsel %vm515, 0.0, %v823
      %v831 = vrot.slane %v813, 1
      %v832 = vrot.slane %v818, 1
      %v833 = vsel %vm524, %v831, %v832
      %v836 = vsel %vm524, %v832, 0.0
      %v837 = vadd.f32 %v828, %v721
      %v838 = vadd.f32 %v825, %v726
      %v839 = vadd.f32 %v837, %v833
      %v840 = vadd.f32 %v838, %v836
      %v842 = vlaneseq
      %v843 = vshrl.u32 %v842, 7
      %v844 = vsub.s32 0, %v843
      %v845 = vrot.slane %v545, %v844
      %v847 = vadd.f32 %v839, %v845
      %v848 = vadd.f32 %v840, %v845
      %v849 = vld [vmem:[%s5] sm:$0xff]
      %v850 = vld [vmem:[%s5 + $0x8] sm:$0xff]
      %v851 = vld [vmem:[%s5 + $0x10] sm:$0xff]
      %v852 = vld [vmem:[%s5 + $0x18] sm:$0xff]
      %v853 = vld [vmem:[%s5 + $0x20] sm:$0xff]
      %v854 = vld [vmem:[%s5 + $0x28] sm:$0xff]
      %v855 = vld [vmem:[%s5 + $0x30] sm:$0xff]
      %v856 = vld [vmem:[%s5 + $0x38] sm:$0xff]
      %857 = vmatprep.subr.mxu0 0.0
      %858 = vmatpush1.msra.mxu0 0.0
      %859 = vmatprep.subr.mxu0 0.0
      %860 = vmatpush1.msra.mxu0 0.0
      %861 = vmatprep.subr.mxu0 0.0
      %862 = vmatpush1.msra.mxu0 0.0
      %863 = vmatprep.subr.mxu0 0.0
      %864 = vmatpush1.msra.mxu0 0.0
      %865 = vmatprep.subr.mxu0 0.0
      %866 = vmatpush1.msra.mxu0 0.0
      %867 = vmatprep.subr.mxu0 0.0
      %868 = vmatpush1.msra.mxu0 0.0
      %869 = vmatprep.subr.mxu0 0.0
      %870 = vmatpush1.msra.mxu0 0.0
      %871 = vmatprep.subr.mxu0 0.0
      %872 = vmatpush1.msra.mxu0 0.0
      %873 = vmatprep.subr.mxu0 0.0
      %874 = vmatpush1.msra.mxu0 %v856
      %875 = vmatprep.subr.mxu0 0.0
      %876 = vmatpush1.msra.mxu0 %v855
      %877 = vmatprep.subr.mxu0 0.0
      %878 = vmatpush1.msra.mxu0 %v854
      %879 = vmatprep.subr.mxu0 0.0
      %880 = vmatpush1.msra.mxu0 %v853
      %881 = vmatprep.subr.mxu0 0.0
      %882 = vmatpush1.msra.mxu0 %v852
      %883 = vmatprep.subr.mxu0 0.0
      %884 = vmatpush1.msra.mxu0 %v851
      %885 = vmatprep.subr.mxu0 0.0
      %886 = vmatpush1.msra.mxu0 %v850
      %887 = vmatprep.subr.mxu0 0.0
      %888 = vmatpush1.msra.mxu0 %v849
      %889 = vmatprep.subr.mxu0 0.0
      %890 = vmatpush2.msra.mxu0 0.0
      %891 = vmatprep.subr.mxu0 0.0
      %892 = vmatpush2.msra.mxu0 0.0
      %893 = vmatprep.subr.mxu0 0.0
      %894 = vmatpush2.msra.mxu0 0.0
      %895 = vmatprep.subr.mxu0 0.0
      %896 = vmatpush2.msra.mxu0 0.0
      %897 = vmatprep.subr.mxu0 0.0
      %898 = vmatpush2.msra.mxu0 0.0
      %899 = vmatprep.subr.mxu0 0.0
      %900 = vmatpush2.msra.mxu0 0.0
      %901 = vmatprep.subr.mxu0 0.0
      %902 = vmatpush2.msra.mxu0 0.0
      %903 = vmatprep.subr.mxu0 0.0
      %904 = vmatpush2.msra.mxu0 0.0
      %905 = vmatprep.subr.mxu0 0.0
      %906 = vmatpush2.msra.mxu0 0.0
      %907 = vmatprep.subr.mxu0 0.0
      %908 = vmatpush2.msra.mxu0 0.0
      %909 = vmatprep.subr.mxu0 0.0
      %910 = vmatpush2.msra.mxu0 0.0
      %911 = vmatprep.subr.mxu0 0.0
      %912 = vmatpush2.msra.mxu0 0.0
      %913 = vmatprep.subr.mxu0 0.0
      %914 = vmatpush2.msra.mxu0 0.0
      %915 = vmatprep.subr.mxu0 0.0
      %916 = vmatpush2.msra.mxu0 0.0
      %917 = vmatprep.subr.mxu0 0.0
      %918 = vmatpush2.msra.mxu0 0.0
      %919 = vmatprep.subr.mxu0 0.0
      %920 = vmatpush2.msra.mxu0 0.0
      %921 = vmatprep.mubr.f32.mxu0 0.0
      %922 = vmatmul.mubr.f32.gmra.mxu0 %v265
      %v923 = vpop.f32.mrf.mxu0
      %v924 = vadd.f32 0.0, %v923
      %v925 = vpop.f32.mrf.mxu0
      %926 = vmatprep.mubr.f32.mxu0 0.0
      %927 = vmatmul.mubr.f32.gmra.mxu0 %v268
      %v928 = vpop.f32.mrf.mxu0
      %v929 = vadd.f32 0.0, %v928
      %v930 = vpop.f32.mrf.mxu0
      %931 = vdwg.mxu0
      %v932 = vadd.f32 %v847, %v924
      %v933 = vadd.f32 %v848, %v929
      %v934 = vmax.f32 %v932, 0.0
      %v935 = vmax.f32 %v933, 0.0
      %936 = vst [vmem:[%s251] sm:$0xff] %v934
      %937 = vst [vmem:[%s251 + $0x8] sm:$0xff] %v935
      %p938 = scmp.lt.s32.totalorder %s17, 1
      %s939 = scalar_select %p938, %s17, 1
      %s940 = smul.addr %s939, 2
      %s941 = smul.addr %s940, 8
      %s942 = scalar_lea.vmem %s6, %s941
      // Predicated region
      $region45: #{features_processing.1} parent=43 // pred_check
        %p943 = pneg %p166
      $region46: #{features_processing.1} parent=43 // pred_check_branch
        %945 = sbr.rel (%p943) target = $region48
      $region47: #{features_processing.1} parent=43 // pred_region
        _
      $region48: #{features_processing.1} parent=43 // pred_fallthru
        _
    $region44: #{features_processing.1} parent=5 // pred_fallthru
      _
    %p946 = scmp.le.s32.totalorder 2, %s12
    // Predicated region
    $region49: #{features_processing.1} parent=5 // pred_check
      %p947 = pneg %p946
    $region50: #{features_processing.1} parent=5 // pred_check_branch
      %949 = sbr.rel (%p947) target = $region52
    $region51: #{features_processing.1} parent=5 // pred_region
      %s950 = ssub.s32 %s12, 2
      // Predicated region
      $region53: #{features_processing.1} parent=51 // pred_check
        %p951 = pneg %p172
      $region54: #{features_processing.1} parent=51 // pred_check_branch
        %953 = sbr.rel (%p951) target = $region56
      $region55: #{features_processing.1} parent=51 // pred_region
        %p954 = scmp.lt.s32.totalorder %s18, 1
        %s955 = scalar_select %p954, %s18, 1
        %s956 = smul.addr %s955, 2
        %s957 = smul.addr %s956, 8
        %s958 = scalar_lea.vmem %s6, %s957
      $region56: #{features_processing.1} parent=51 // pred_fallthru
        _
    $region52: #{features_processing.1} parent=5 // pred_fallthru
      _
  $region6: #{features_processing.1} parent=0 // loop_footer
    %s16 = sadd.s32 1, %s12
  $region7: #{features_processing.1} parent=0 // loop_footer_branch
    %11 = sbr.rel target = $region3
  $region8: #{features_processing.1} parent=0 // loop_exit
    _

</llo_original>
